<compile_context>
chip_gen: v7x
topology: tpu7x:2x2x1
jax: 0.10.0
libtpu: 0.0.40
codegen_flags: <defaults>
</compile_context>

<pallas_src>
import functools

import jax
import jax.numpy as jnp
from jax.experimental import pallas as pl
from jax.experimental.pallas import tpu as pltpu

SH_DEGREE = 3
SH_SIZE = (SH_DEGREE + 1) ** 2  # 16  (rsh_cart_3)


def _round_up(v, m):
    return ((v + m - 1) // m) * m


def _sh3_terms(x, y, z):
    """Real spherical harmonics up to degree 3 (rsh_cart_3 convention).

    x, y, z: arrays of identical shape (components of unit directions).
    Returns a list of 16 arrays of that same shape, ordered Ynm at n*(n+1)+m.
    """
    x2, y2, z2 = x * x, y * y, z * z
    xy, xz, yz = x * y, x * z, y * z
    ones = jnp.ones_like(x)
    return [
        0.28209479177387814 * ones,
        -0.4886025119029199 * y,
        0.4886025119029199 * z,
        -0.4886025119029199 * x,
        1.0925484305920792 * xy,
        -1.0925484305920792 * yz,
        0.9461746957575601 * z2 - 0.31539156525252005,
        -1.0925484305920792 * xz,
        0.5462742152960396 * (x2 - y2),
        -0.5900435899266435 * y * (3.0 * x2 - y2),
        2.890611442640554 * xy * z,
        0.4570457994644658 * y * (1.0 - 5.0 * z2),
        0.3731763325901154 * z * (5.0 * z2 - 3.0),
        0.4570457994644658 * x * (1.0 - 5.0 * z2),
        1.445305721320277 * z * (x2 - y2),
        -0.5900435899266435 * x * (x2 - 3.0 * y2),
    ]


def _directional_mlp_kernel(din_ref, w0_ref, b0_ref, wh_ref, bh_ref,
                            wo_ref, bo_ref, o_ref, *,
                            hidden_layers, in_x, compute_dtype):
    # din layout (feature-major): rows [0:in_x] = x^T, rows [in_x:in_x+3] = dir^T.
    x_t = din_ref[0:in_x, :]                       # (IN_X, tile)  -- sublane aligned
    dx = din_ref[in_x + 0:in_x + 1, :]             # (1, tile)
    dy = din_ref[in_x + 1:in_x + 2, :]
    dz = din_ref[in_x + 2:in_x + 3, :]

    # SH basis rows computed in f32 on the VPU (v5e-safe), then stacked along
    # sublanes together with x^T so the whole first layer is ONE MXU matmul
    # (no 16-deep serial FMA chain, no lane-wise concat).
    coeffs = _sh3_terms(dx, dy, dz)                # 16 x (1, tile), f32
    feat = jnp.concatenate(coeffs + [x_t], axis=0)  # (SH_SIZE + IN_X, tile)
    feat = feat.astype(compute_dtype)

    # Layer 0: (HIDDEN, IN_FEAT) @ (IN_FEAT, tile) -> (HIDDEN, tile), f32 acc.
    h = jnp.dot(w0_ref[...], feat, preferred_element_type=jnp.float32)
    h = jnp.maximum(h + b0_ref[...], 0.0)          # bias (HIDDEN, 1) + ReLU in f32

    # Hidden layers: index the stacked weights per layer (no (L,H,H) in vregs).
    for l in range(hidden_layers):
        h = jnp.dot(wh_ref[l], h.astype(compute_dtype),
                    preferred_element_type=jnp.float32)
        h = jnp.maximum(h + bh_ref[l], 0.0)

    # Output layer (Identity activation): (OUT, HIDDEN) @ (HIDDEN, tile).
    out = jnp.dot(wo_ref[...], h.astype(compute_dtype),
                  preferred_element_type=jnp.float32)
    o_ref[...] = (out + bo_ref[...]).astype(o_ref.dtype)  # lane-dense store


def directional_mlp(dirs, x, params, *, tile_n=1024,
                    compute_dtype=jnp.float32):
    """Forward pass of DirectionalMLP.

    params use torch.nn.Linear's native layout:
      w0: (HIDDEN, SH_SIZE + IN_X)   b0: (HIDDEN,)
      wh: (L, HIDDEN, HIDDEN)        bh: (L, HIDDEN)
      wo: (OUT, HIDDEN)              bo: (OUT,)
    """
    n, in_x = x.shape
    hidden, in_feat = params["w0"].shape
    assert in_feat == SH_SIZE + in_x
    outputs = params["wo"].shape[0]
    num_hidden_layers = params["wh"].shape[0]
    out_dtype = x.dtype

    # One fused, feature-major input slab: (IN_X + 3, N).
    din = jnp.concatenate([x, dirs.astype(x.dtype)], axis=1).T

    # Batch tiling: large lane-dense tiles, pad the tail (any N supported).
    tile = _round_up(max(int(tile_n), 128), 128)
    tile = min(tile, _round_up(n, 128))
    n_pad = _round_up(n, tile)
    if n_pad != n:
        din = jnp.pad(din, ((0, 0), (0, n_pad - n)))

    # Weights in the matmul compute dtype (bf16 halves MXU passes on all gens);
    # biases stay f32 so the VPU add/ReLU path is f32 (v5e has no bf16 VPU).
    w0 = params["w0"].astype(compute_dtype)
    wh = params["wh"].astype(compute_dtype)
    wo = params["wo"].astype(compute_dtype)
    b0 = params["b0"].reshape(hidden, 1).astype(jnp.float32)
    bh = params["bh"].reshape(num_hidden_layers, hidden, 1).astype(jnp.float32)
    bo = params["bo"].reshape(outputs, 1).astype(jnp.float32)

    kernel = functools.partial(
        _directional_mlp_kernel,
        hidden_layers=num_hidden_layers, in_x=in_x,
        compute_dtype=jnp.dtype(compute_dtype))

    out_t = pl.pallas_call(
        kernel,
        out_shape=jax.ShapeDtypeStruct((outputs, n_pad), out_dtype),
        grid_spec=pltpu.PrefetchScalarGridSpec(
            num_scalar_prefetch=0,
            grid=(n_pad // tile,),
            in_specs=[
                pl.BlockSpec((in_x + 3, tile), lambda i: (0, i)),   # [x; dir]^T
                pl.BlockSpec((hidden, in_feat), lambda i: (0, 0)),  # w0
                pl.BlockSpec((hidden, 1), lambda i: (0, 0)),        # b0
                pl.BlockSpec((num_hidden_layers, hidden, hidden),
                             lambda i: (0, 0, 0)),                  # wh
                pl.BlockSpec((num_hidden_layers, hidden, 1),
                             lambda i: (0, 0, 0)),                  # bh
                pl.BlockSpec((outputs, hidden), lambda i: (0, 0)),  # wo
                pl.BlockSpec((outputs, 1), lambda i: (0, 0)),       # bo
            ],
            out_specs=pl.BlockSpec((outputs, tile), lambda i: (0, i)),
        ),
        compiler_params=pltpu.CompilerParams(
            dimension_semantics=("parallel",),
            vmem_limit_bytes=32 * 1024 * 1024),
    )(din, w0, b0, wh, bh, wo, bo)

    # Back to batch-major (layout plumbing handled by XLA) and drop padding.
    return out_t.T[:n]


# ------------------------- pure-JAX reference ------------------------------
def _sh3_ref(dirs):
    x, y, z = dirs[:, 0:1], dirs[:, 1:2], dirs[:, 2:3]
    return jnp.concatenate(_sh3_terms(x, y, z), axis=1)


def ref_forward(dirs, x, params):
    h = jnp.concatenate([_sh3_ref(dirs).astype(x.dtype), x], axis=1)
    h = jnp.maximum(h @ params["w0"].T + params["b0"], 0.0)
    for l in range(params["wh"].shape[0]):
        h = jnp.maximum(h @ params["wh"][l].T + params["bh"][l], 0.0)
    return h @ params["wo"].T + params["bo"]


if __name__ == "__main__":
    # Small demo shapes (N not a multiple of 128 to exercise tail padding).
    N, IN_X, HIDDEN, OUT, HIDDEN_LAYERS = 200, 16, 32, 3, 2
    IN_FEAT = SH_SIZE + IN_X

    key = jax.random.PRNGKey(0)
    kd, kx, kw0, kb0, kwh, kbh, kwo, kbo = jax.random.split(key, 8)

    dirs = jax.random.normal(kd, (N, 3), jnp.float32)
    dirs = dirs / jnp.linalg.norm(dirs, axis=1, keepdims=True)
    x = jax.random.normal(kx, (N, IN_X), jnp.float32)

    # Deterministic init mimicking torch.nn.Linear's U(-1/sqrt(fan_in), ...).
    def lin_init(k, fan_in, shape):
        bound = 1.0 / float(fan_in) ** 0.5
        return jax.random.uniform(k, shape, jnp.float32, -bound, bound)

    params = {  # torch layout: weight (out, in), bias (out,)
        "w0": lin_init(kw0, IN_FEAT, (HIDDEN, IN_FEAT)),
        "b0": lin_init(kb0, IN_FEAT, (HIDDEN,)),
        "wh": lin_init(kwh, HIDDEN, (HIDDEN_LAYERS, HIDDEN, HIDDEN)),
        "bh": lin_init(kbh, HIDDEN, (HIDDEN_LAYERS, HIDDEN)),
        "wo": lin_init(kwo, HIDDEN, (OUT, HIDDEN)),
        "bo": lin_init(kbo, HIDDEN, (OUT,)),
    }

    expected = ref_forward(dirs, x, params)

    # f32 matmul path (bit-accurate vs reference up to accumulation order).
    out = jax.block_until_ready(directional_mlp(dirs, x, params))
    assert out.shape == (N, OUT), out.shape
    assert jnp.allclose(out, expected, atol=1e-4, rtol=1e-4), (
        float(jnp.max(jnp.abs(out - expected))))

    # bf16 matmul path (f32 accumulation) -- looser tolerance.
    out_bf16 = jax.block_until_ready(
        directional_mlp(dirs, x, params, compute_dtype=jnp.bfloat16))
    assert out_bf16.shape == (N, OUT), out_bf16.shape
    assert jnp.allclose(out_bf16, expected, atol=1e-1, rtol=1e-1), (
        float(jnp.max(jnp.abs(out_bf16 - expected))))

    print("KERNEL_OK")
</pallas_src>

<mosaic_0001>
module attributes {stable_mosaic.version = 11 : i64} {
  func.func @_directional_mlp_kernel(%arg0: i32, %arg1: memref<19x256xf32, #tpu.memory_space<vmem>>, %arg2: memref<32x32xf32, #tpu.memory_space<vmem>>, %arg3: memref<32x1xf32, #tpu.memory_space<vmem>>, %arg4: memref<2x32x32xf32, #tpu.memory_space<vmem>>, %arg5: memref<2x32x1xf32, #tpu.memory_space<vmem>>, %arg6: memref<3x32xf32, #tpu.memory_space<vmem>>, %arg7: memref<3x1xf32, #tpu.memory_space<vmem>>, %arg8: memref<3x256xf32, #tpu.memory_space<vmem>>) attributes {dimension_semantics = [#tpu.dimension_semantics<parallel>], iteration_bounds = array<i64: 1>, scalar_prefetch = 0 : i64, scratch_operands = 0 : i64, tpu.core_type = #tpu.core_type<tc>, window_params = [{transform_indices = @transform_0, window_bounds = array<i64: 19, 256>}, {pipeline_mode = #tpu.pipeline_mode<synchronous>, transform_indices = @transform_1, window_bounds = array<i64: 32, 32>}, {pipeline_mode = #tpu.pipeline_mode<synchronous>, transform_indices = @transform_2, window_bounds = array<i64: 32, 1>}, {pipeline_mode = #tpu.pipeline_mode<synchronous>, transform_indices = @transform_3, window_bounds = array<i64: 2, 32, 32>}, {pipeline_mode = #tpu.pipeline_mode<synchronous>, transform_indices = @transform_4, window_bounds = array<i64: 2, 32, 1>}, {pipeline_mode = #tpu.pipeline_mode<synchronous>, transform_indices = @transform_5, window_bounds = array<i64: 3, 32>}, {pipeline_mode = #tpu.pipeline_mode<synchronous>, transform_indices = @transform_6, window_bounds = array<i64: 3, 1>}, {transform_indices = @transform_7, window_bounds = array<i64: 3, 256>}]} {
    %c0 = arith.constant 0 : index
    %c0_0 = arith.constant 0 : index
    %0 = vector.load %arg1[%c0, %c0_0] : memref<19x256xf32, #tpu.memory_space<vmem>>, vector<16x256xf32>
    %c16 = arith.constant 16 : index
    %c0_1 = arith.constant 0 : index
    %1 = vector.load %arg1[%c16, %c0_1] : memref<19x256xf32, #tpu.memory_space<vmem>>, vector<1x256xf32>
    %c17 = arith.constant 17 : index
    %c0_2 = arith.constant 0 : index
    %2 = vector.load %arg1[%c17, %c0_2] : memref<19x256xf32, #tpu.memory_space<vmem>>, vector<1x256xf32>
    %c18 = arith.constant 18 : index
    %c0_3 = arith.constant 0 : index
    %3 = vector.load %arg1[%c18, %c0_3] : memref<19x256xf32, #tpu.memory_space<vmem>>, vector<1x256xf32>
    %4 = arith.mulf %1, %1 : vector<1x256xf32>
    %5 = arith.mulf %2, %2 : vector<1x256xf32>
    %6 = arith.mulf %3, %3 : vector<1x256xf32>
    %7 = arith.mulf %1, %2 : vector<1x256xf32>
    %8 = arith.mulf %1, %3 : vector<1x256xf32>
    %9 = arith.mulf %2, %3 : vector<1x256xf32>
    %cst = arith.constant 1.000000e+00 : f32
    %10 = vector.broadcast %cst : f32 to vector<1x256xf32>
    %cst_4 = arith.constant 0.282094806 : f32
    %11 = vector.broadcast %cst_4 : f32 to vector<1x256xf32>
    %12 = arith.mulf %11, %10 : vector<1x256xf32>
    %cst_5 = arith.constant -0.488602519 : f32
    %13 = vector.broadcast %cst_5 : f32 to vector<1x256xf32>
    %14 = arith.mulf %13, %2 : vector<1x256xf32>
    %cst_6 = arith.constant 0.488602519 : f32
    %15 = vector.broadcast %cst_6 : f32 to vector<1x256xf32>
    %16 = arith.mulf %15, %3 : vector<1x256xf32>
    %cst_7 = arith.constant -0.488602519 : f32
    %17 = vector.broadcast %cst_7 : f32 to vector<1x256xf32>
    %18 = arith.mulf %17, %1 : vector<1x256xf32>
    %cst_8 = arith.constant 1.09254849 : f32
    %19 = vector.broadcast %cst_8 : f32 to vector<1x256xf32>
    %20 = arith.mulf %19, %7 : vector<1x256xf32>
    %cst_9 = arith.constant -1.09254849 : f32
    %21 = vector.broadcast %cst_9 : f32 to vector<1x256xf32>
    %22 = arith.mulf %21, %9 : vector<1x256xf32>
    %cst_10 = arith.constant 0.946174681 : f32
    %23 = vector.broadcast %cst_10 : f32 to vector<1x256xf32>
    %24 = arith.mulf %23, %6 : vector<1x256xf32>
    %cst_11 = arith.constant 0.31539157 : f32
    %25 = vector.broadcast %cst_11 : f32 to vector<1x256xf32>
    %26 = arith.subf %24, %25 : vector<1x256xf32>
    %cst_12 = arith.constant -1.09254849 : f32
    %27 = vector.broadcast %cst_12 : f32 to vector<1x256xf32>
    %28 = arith.mulf %27, %8 : vector<1x256xf32>
    %29 = arith.subf %4, %5 : vector<1x256xf32>
    %cst_13 = arith.constant 0.546274245 : f32
    %30 = vector.broadcast %cst_13 : f32 to vector<1x256xf32>
    %31 = arith.mulf %30, %29 : vector<1x256xf32>
    %cst_14 = arith.constant -0.590043604 : f32
    %32 = vector.broadcast %cst_14 : f32 to vector<1x256xf32>
    %33 = arith.mulf %32, %2 : vector<1x256xf32>
    %cst_15 = arith.constant 3.000000e+00 : f32
    %34 = vector.broadcast %cst_15 : f32 to vector<1x256xf32>
    %35 = arith.mulf %34, %4 : vector<1x256xf32>
    %36 = arith.subf %35, %5 : vector<1x256xf32>
    %37 = arith.mulf %33, %36 : vector<1x256xf32>
    %cst_16 = arith.constant 2.89061141 : f32
    %38 = vector.broadcast %cst_16 : f32 to vector<1x256xf32>
    %39 = arith.mulf %38, %7 : vector<1x256xf32>
    %40 = arith.mulf %39, %3 : vector<1x256xf32>
    %cst_17 = arith.constant 0.457045794 : f32
    %41 = vector.broadcast %cst_17 : f32 to vector<1x256xf32>
    %42 = arith.mulf %41, %2 : vector<1x256xf32>
    %cst_18 = arith.constant 5.000000e+00 : f32
    %43 = vector.broadcast %cst_18 : f32 to vector<1x256xf32>
    %44 = arith.mulf %43, %6 : vector<1x256xf32>
    %cst_19 = arith.constant 1.000000e+00 : f32
    %45 = vector.broadcast %cst_19 : f32 to vector<1x256xf32>
    %46 = arith.subf %45, %44 : vector<1x256xf32>
    %47 = arith.mulf %42, %46 : vector<1x256xf32>
    %cst_20 = arith.constant 0.373176336 : f32
    %48 = vector.broadcast %cst_20 : f32 to vector<1x256xf32>
    %49 = arith.mulf %48, %3 : vector<1x256xf32>
    %cst_21 = arith.constant 5.000000e+00 : f32
    %50 = vector.broadcast %cst_21 : f32 to vector<1x256xf32>
    %51 = arith.mulf %50, %6 : vector<1x256xf32>
    %cst_22 = arith.constant 3.000000e+00 : f32
    %52 = vector.broadcast %cst_22 : f32 to vector<1x256xf32>
    %53 = arith.subf %51, %52 : vector<1x256xf32>
    %54 = arith.mulf %49, %53 : vector<1x256xf32>
    %cst_23 = arith.constant 0.457045794 : f32
    %55 = vector.broadcast %cst_23 : f32 to vector<1x256xf32>
    %56 = arith.mulf %55, %1 : vector<1x256xf32>
    %cst_24 = arith.constant 5.000000e+00 : f32
    %57 = vector.broadcast %cst_24 : f32 to vector<1x256xf32>
    %58 = arith.mulf %57, %6 : vector<1x256xf32>
    %cst_25 = arith.constant 1.000000e+00 : f32
    %59 = vector.broadcast %cst_25 : f32 to vector<1x256xf32>
    %60 = arith.subf %59, %58 : vector<1x256xf32>
    %61 = arith.mulf %56, %60 : vector<1x256xf32>
    %cst_26 = arith.constant 1.44530571 : f32
    %62 = vector.broadcast %cst_26 : f32 to vector<1x256xf32>
    %63 = arith.mulf %62, %3 : vector<1x256xf32>
    %64 = arith.subf %4, %5 : vector<1x256xf32>
    %65 = arith.mulf %63, %64 : vector<1x256xf32>
    %cst_27 = arith.constant -0.590043604 : f32
    %66 = vector.broadcast %cst_27 : f32 to vector<1x256xf32>
    %67 = arith.mulf %66, %1 : vector<1x256xf32>
    %cst_28 = arith.constant 3.000000e+00 : f32
    %68 = vector.broadcast %cst_28 : f32 to vector<1x256xf32>
    %69 = arith.mulf %68, %5 : vector<1x256xf32>
    %70 = arith.subf %4, %69 : vector<1x256xf32>
    %71 = arith.mulf %67, %70 : vector<1x256xf32>
    %72 = tpu.concatenate %12, %14, %16, %18, %20, %22, %26, %28, %31, %37, %40, %47, %54, %61, %65, %71 in 0 : vector<1x256xf32>, vector<1x256xf32>, vector<1x256xf32>, vector<1x256xf32>, vector<1x256xf32>, vector<1x256xf32>, vector<1x256xf32>, vector<1x256xf32>, vector<1x256xf32>, vector<1x256xf32>, vector<1x256xf32>, vector<1x256xf32>, vector<1x256xf32>, vector<1x256xf32>, vector<1x256xf32>, vector<1x256xf32> -> vector<16x256xf32>
    %73 = tpu.concatenate %72, %0 in 0 : vector<16x256xf32>, vector<16x256xf32> -> vector<32x256xf32>
    %c0_29 = arith.constant 0 : index
    %c0_30 = arith.constant 0 : index
    %74 = vector.load %arg2[%c0_29, %c0_30] : memref<32x32xf32, #tpu.memory_space<vmem>>, vector<32x32xf32>
    %cst_31 = arith.constant dense<0.000000e+00> : vector<32x256xf32>
    %75 = tpu.matmul %74, %73, %cst_31 {dimension_numbers = #tpu.dot_dimension_numbers<[1], [0], [0], [1], [0, 0, 1, 1], [], []>} : vector<32x32xf32>, vector<32x256xf32>, vector<32x256xf32> -> vector<32x256xf32>
    %c0_32 = arith.constant 0 : index
    %c0_33 = arith.constant 0 : index
    %76 = vector.load %arg3[%c0_32, %c0_33] : memref<32x1xf32, #tpu.memory_space<vmem>>, vector<32x1xf32>
    %77 = vector.broadcast %76 : vector<32x1xf32> to vector<32x256xf32>
    %78 = arith.addf %75, %77 : vector<32x256xf32>
    %cst_34 = arith.constant 0.000000e+00 : f32
    %79 = vector.broadcast %cst_34 : f32 to vector<32x256xf32>
    %80 = arith.maximumf %78, %79 : vector<32x256xf32>
    %c0_35 = arith.constant 0 : index
    %c0_36 = arith.constant 0 : index
    %c0_37 = arith.constant 0 : index
    %81 = vector.load %arg4[%c0_35, %c0_36, %c0_37] : memref<2x32x32xf32, #tpu.memory_space<vmem>>, vector<1x32x32xf32>
    %82 = vector.shape_cast %81 : vector<1x32x32xf32> to vector<32x32xf32>
    %cst_38 = arith.constant dense<0.000000e+00> : vector<32x256xf32>
    %83 = tpu.matmul %82, %80, %cst_38 {dimension_numbers = #tpu.dot_dimension_numbers<[1], [0], [0], [1], [0, 0, 1, 1], [], []>} : vector<32x32xf32>, vector<32x256xf32>, vector<32x256xf32> -> vector<32x256xf32>
    %c0_39 = arith.constant 0 : index
    %c0_40 = arith.constant 0 : index
    %c0_41 = arith.constant 0 : index
    %84 = vector.load %arg5[%c0_39, %c0_40, %c0_41] : memref<2x32x1xf32, #tpu.memory_space<vmem>>, vector<1x32x1xf32>
    %85 = vector.shape_cast %84 : vector<1x32x1xf32> to vector<32x1xf32>
    %86 = vector.broadcast %85 : vector<32x1xf32> to vector<32x256xf32>
    %87 = arith.addf %83, %86 : vector<32x256xf32>
    %cst_42 = arith.constant 0.000000e+00 : f32
    %88 = vector.broadcast %cst_42 : f32 to vector<32x256xf32>
    %89 = arith.maximumf %87, %88 : vector<32x256xf32>
    %c1 = arith.constant 1 : index
    %c0_43 = arith.constant 0 : index
    %c0_44 = arith.constant 0 : index
    %90 = vector.load %arg4[%c1, %c0_43, %c0_44] : memref<2x32x32xf32, #tpu.memory_space<vmem>>, vector<1x32x32xf32>
    %91 = vector.shape_cast %90 : vector<1x32x32xf32> to vector<32x32xf32>
    %cst_45 = arith.constant dense<0.000000e+00> : vector<32x256xf32>
    %92 = tpu.matmul %91, %89, %cst_45 {dimension_numbers = #tpu.dot_dimension_numbers<[1], [0], [0], [1], [0, 0, 1, 1], [], []>} : vector<32x32xf32>, vector<32x256xf32>, vector<32x256xf32> -> vector<32x256xf32>
    %c1_46 = arith.constant 1 : index
    %c0_47 = arith.constant 0 : index
    %c0_48 = arith.constant 0 : index
    %93 = vector.load %arg5[%c1_46, %c0_47, %c0_48] : memref<2x32x1xf32, #tpu.memory_space<vmem>>, vector<1x32x1xf32>
    %94 = vector.shape_cast %93 : vector<1x32x1xf32> to vector<32x1xf32>
    %95 = vector.broadcast %94 : vector<32x1xf32> to vector<32x256xf32>
    %96 = arith.addf %92, %95 : vector<32x256xf32>
    %cst_49 = arith.constant 0.000000e+00 : f32
    %97 = vector.broadcast %cst_49 : f32 to vector<32x256xf32>
    %98 = arith.maximumf %96, %97 : vector<32x256xf32>
    %c0_50 = arith.constant 0 : index
    %c0_51 = arith.constant 0 : index
    %99 = vector.load %arg6[%c0_50, %c0_51] : memref<3x32xf32, #tpu.memory_space<vmem>>, vector<3x32xf32>
    %cst_52 = arith.constant dense<0.000000e+00> : vector<3x256xf32>
    %100 = tpu.matmul %99, %98, %cst_52 {dimension_numbers = #tpu.dot_dimension_numbers<[1], [0], [0], [1], [0, 0, 1, 1], [], []>} : vector<3x32xf32>, vector<32x256xf32>, vector<3x256xf32> -> vector<3x256xf32>
    %c0_53 = arith.constant 0 : index
    %c0_54 = arith.constant 0 : index
    %101 = vector.load %arg7[%c0_53, %c0_54] : memref<3x1xf32, #tpu.memory_space<vmem>>, vector<3x1xf32>
    %102 = vector.broadcast %101 : vector<3x1xf32> to vector<3x256xf32>
    %103 = arith.addf %100, %102 : vector<3x256xf32>
    %c0_55 = arith.constant 0 : index
    %c0_56 = arith.constant 0 : index
    %104 = vector.load %arg8[%c0_55, %c0_56] : memref<3x256xf32, #tpu.memory_space<vmem>>, vector<3x256xf32>
    tpu.vector_store %arg8[%c0_55, %c0_56], %103 {strides = array<i32>} : memref<3x256xf32, #tpu.memory_space<vmem>>, vector<3x256xf32>,
    return
  }
  func.func @transform_0(%arg0: i32) -> (i32, i32) {
    %c0_i32 = arith.constant 0 : i32
    %c0_i32_0 = arith.constant 0 : i32
    return %c0_i32, %arg0 : i32, i32
  }
  func.func @transform_1(%arg0: i32) -> (i32, i32) {
    %c0_i32 = arith.constant 0 : i32
    %c0_i32_0 = arith.constant 0 : i32
    %c0_i32_1 = arith.constant 0 : i32
    return %c0_i32, %c0_i32_0 : i32, i32
  }
  func.func @transform_2(%arg0: i32) -> (i32, i32) {
    %c0_i32 = arith.constant 0 : i32
    %c0_i32_0 = arith.constant 0 : i32
    %c0_i32_1 = arith.constant 0 : i32
    return %c0_i32, %c0_i32_0 : i32, i32
  }
  func.func @transform_3(%arg0: i32) -> (i32, i32, i32) {
    %c0_i32 = arith.constant 0 : i32
    %c0_i32_0 = arith.constant 0 : i32
    %c0_i32_1 = arith.constant 0 : i32
    %c0_i32_2 = arith.constant 0 : i32
    return %c0_i32, %c0_i32_0, %c0_i32_1 : i32, i32, i32
  }
  func.func @transform_4(%arg0: i32) -> (i32, i32, i32) {
    %c0_i32 = arith.constant 0 : i32
    %c0_i32_0 = arith.constant 0 : i32
    %c0_i32_1 = arith.constant 0 : i32
    %c0_i32_2 = arith.constant 0 : i32
    return %c0_i32, %c0_i32_0, %c0_i32_1 : i32, i32, i32
  }
  func.func @transform_5(%arg0: i32) -> (i32, i32) {
    %c0_i32 = arith.constant 0 : i32
    %c0_i32_0 = arith.constant 0 : i32
    %c0_i32_1 = arith.constant 0 : i32
    return %c0_i32, %c0_i32_0 : i32, i32
  }
  func.func @transform_6(%arg0: i32) -> (i32, i32) {
    %c0_i32 = arith.constant 0 : i32
    %c0_i32_0 = arith.constant 0 : i32
    %c0_i32_1 = arith.constant 0 : i32
    return %c0_i32, %c0_i32_0 : i32, i32
  }
  func.func @transform_7(%arg0: i32) -> (i32, i32) {
    %c0_i32 = arith.constant 0 : i32
    %c0_i32_0 = arith.constant 0 : i32
    return %c0_i32, %arg0 : i32, i32
  }
}

</mosaic_0001>

<llo_original>
// kernel: tpu_custom_call.1
$region0: #{tpu_custom_call.1}
  #allocation0 [shape = 'u32[]', space=smem, size = 0x4, offset = 0x4, fixed_abs, tag = 'smem constant byte address 0x4 - core index']
  #allocation1 [shape = 'u32[144,128]{1,0:T(1,128)}', space=vmem, size = 0x12000, scoped, tag = 'internal scratch']
  %s0 = inlined_call_operand.vmem [shape: f32[19,256], index: 0, kind: input, shape index: {}]
  %s1 = inlined_call_operand.hbm [shape: f32[32,32], index: 1, kind: input, shape index: {}]
  %s2 = inlined_call_operand.vmem [shape: f32[32,1], index: 2, kind: input, shape index: {}]
  %s3 = inlined_call_operand.vmem [shape: f32[2,32,32], index: 3, kind: input, shape index: {}]
  %s4 = inlined_call_operand.vmem [shape: f32[2,32,1], index: 4, kind: input, shape index: {}]
  %s5 = inlined_call_operand.vmem [shape: f32[3,32], index: 5, kind: input, shape index: {}]
  %s6 = inlined_call_operand.vmem [shape: f32[3,1], index: 6, kind: input, shape index: {}]
  %s7 = inlined_call_operand.hbm [shape: f32[3,256], index: 7, kind: output, shape index: {}]
  %s8 = sld [smem:[#allocation0]]
  $region42: #{tpu_custom_call.1} parent=0
    _
  %s10 = ssub.s32 1, %s8
  %s11 = scalar_select 0, %s10, %s8
  $region1: #{tpu_custom_call.1} parent=0
    #allocation2 [shape = 'u8[16384]{0}', space=vmem, size = 0x4000, scoped, tag = 'input window, operand 1, single buffered']
    #allocation3 [shape = 's32[1]{0}', space=sflag, size = 0x4, scoped, tag = 'scoped memory for tpu_custom_call.1']
    #allocation4 [shape = 's32[1]{0}', space=sflag, size = 0x4, scoped, tag = 'scoped memory for tpu_custom_call.1']
    #allocation5 [shape = 'u8[4096]{0}', space=vmem, size = 0x1000, scoped, tag = 'output window, operand 0, single buffered']
    %12 = vsyncpa [#allocation3], 0
    %13 = vsyncpa [#allocation4], 0
    // Predicated region
    $region2: #{tpu_custom_call.1} parent=1 // pred_check
      _
    $region3: #{tpu_custom_call.1} parent=1 // pred_check_branch
      %15 = sbr.rel (0) target = $region5
    $region4: #{tpu_custom_call.1} parent=1 // pred_region
      _
    $region5: #{tpu_custom_call.1} parent=1 // pred_fallthru
      _
    // Predicated region
    $region6: #{tpu_custom_call.1} parent=1 // pred_check
      _
    $region7: #{tpu_custom_call.1} parent=1 // pred_check_branch
      %17 = sbr.rel (0) target = $region9
    $region8: #{tpu_custom_call.1} parent=1 // pred_region
      %s19 = ssub.s32 512, 512
      %20 = vsyncadd [#allocation3], %s19
      %s21 = sshll.u32 [#allocation2], 4
      %s22 = int_to_ptr.vmem [resolvable:$true] %s21
      %27 = dma.hbm_to_vmem [thread:$0]  %s1, 512, %s22, [#allocation3], 128, 128, 8
    $region9: #{tpu_custom_call.1} parent=1 // pred_fallthru
      _
    // Predicated region
    $region10: #{tpu_custom_call.1} parent=1 // pred_check
      _
    $region11: #{tpu_custom_call.1} parent=1 // pred_check_branch
      %29 = sbr.rel (0) target = $region13
    $region12: #{tpu_custom_call.1} parent=1 // pred_region
      _
    $region13: #{tpu_custom_call.1} parent=1 // pred_fallthru
      _
    // Predicated region
    $region14: #{tpu_custom_call.1} parent=1 // pred_check
      _
    $region15: #{tpu_custom_call.1} parent=1 // pred_check_branch
      %31 = sbr.rel (0) target = $region17
    $region16: #{tpu_custom_call.1} parent=1 // pred_region
      _
    $region17: #{tpu_custom_call.1} parent=1 // pred_fallthru
      _
    // Predicated region
    $region18: #{tpu_custom_call.1} parent=1 // pred_check
      _
    $region19: #{tpu_custom_call.1} parent=1 // pred_check_branch
      %33 = sbr.rel (0) target = $region21
    $region20: #{tpu_custom_call.1} parent=1 // pred_region
      _
    $region21: #{tpu_custom_call.1} parent=1 // pred_fallthru
      _
    // Predicated region
    $region22: #{tpu_custom_call.1} parent=1 // pred_check
      _
    $region23: #{tpu_custom_call.1} parent=1 // pred_check_branch
      %35 = sbr.rel (0) target = $region25
    $region24: #{tpu_custom_call.1} parent=1 // pred_region
      _
    $region25: #{tpu_custom_call.1} parent=1 // pred_fallthru
      _
    // Predicated region
    $region26: #{tpu_custom_call.1} parent=1 // pred_check
      _
    $region27: #{tpu_custom_call.1} parent=1 // pred_check_branch
      %37 = sbr.rel (0) target = $region29
    $region28: #{tpu_custom_call.1} parent=1 // pred_region
      _
    $region29: #{tpu_custom_call.1} parent=1 // pred_fallthru
      _
    // Predicated region
    $region30: #{tpu_custom_call.1} parent=1 // pred_check
      _
    $region31: #{tpu_custom_call.1} parent=1 // pred_check_branch
      %39 = sbr.rel (0) target = $region33
    $region32: #{tpu_custom_call.1} parent=1 // pred_region
      %40 = dma.done [#allocation3], 512
    $region33: #{tpu_custom_call.1} parent=1 // pred_fallthru
      _
    %v41 = vld [vmem:[%s0] sm:$0xff]
    %v42 = vld [vmem:[%s0 + $0x8] sm:$0xff]
    %v43 = vld [vmem:[%s0 + $0x10] sm:$0xff]
    %v44 = vld [vmem:[%s0 + $0x18] sm:$0xff]
    %s45 = scalar_lea.vmem %s0, 32
    %v46 = vld [vmem:[%s45] ss:$8 sm:$0x3]
    %s47 = scalar_lea.vmem %s0, 33
    %v48 = vld [vmem:[%s47] ss:$8 sm:$0x3]
    %s49 = scalar_lea.vmem %s0, 34
    %v50 = vld [vmem:[%s49] ss:$8 sm:$0x3]
    %v51 = vmul.f32 %v46, %v46
    %v52 = vmul.f32 %v48, %v48
    %v53 = vmul.f32 %v50, %v50
    %v54 = vmul.f32 %v46, %v48
    %v55 = vmul.f32 %v46, %v50
    %v56 = vmul.f32 %v48, %v50
    %v57 = vmul.f32 %v48, -0.48860252
    %v58 = vmul.f32 %v50, 0.48860252
    %v59 = vmul.f32 %v46, -0.48860252
    %v60 = vmul.f32 %v54, 1.0925485
    %v61 = vmul.f32 %v56, -1.0925485
    %v62 = vmul.f32 %v53, 0.9461747
    %v63 = vsub.f32 %v62, 0.31539157
    %v64 = vmul.f32 %v55, -1.0925485
    %v65 = vsub.f32 %v51, %v52
    %v66 = vmul.f32 %v65, 0.54627424
    %v67 = vmul.f32 %v48, -0.5900436
    %v68 = vmul.f32 %v51, 3.0
    %v69 = vsub.f32 %v68, %v52
    %v70 = vmul.f32 %v67, %v69
    %v71 = vmul.f32 %v54, 2.8906114
    %v72 = vmul.f32 %v71, %v50
    %v73 = vmul.f32 %v48, 0.4570458
    %v74 = vmul.f32 %v53, 5.0
    %v75 = vsub.f32 1.0, %v74
    %v76 = vmul.f32 %v73, %v75
    %v77 = vmul.f32 %v50, 0.37317634
    %v78 = vsub.f32 %v74, 3.0
    %v79 = vmul.f32 %v77, %v78
    %v80 = vmul.f32 %v46, 0.4570458
    %v81 = vmul.f32 %v80, %v75
    %v82 = vmul.f32 %v50, 1.4453057
    %v83 = vmul.f32 %v82, %v65
    %v84 = vmul.f32 %v46, -0.5900436
    %v85 = vmul.f32 %v52, 3.0
    %v86 = vsub.f32 %v51, %v85
    %v87 = vmul.f32 %v84, %v86
    %v89 = vlaneseq
    %v90 = vshrl.u32 %v89, 7
    %v91 = vsub.s32 0, %v90
    %v92 = vrot.slane %v57, %v91
    %v93 = vlaneseq
    %v94 = vshrl.u32 %v93, 7
    %v95 = vsub.s32 1, %v94
    %v96 = vrot.slane %v57, %v95
    %v100 = vlaneseq
    %v101 = vshrl.u32 %v100, 7
    %v102 = vsub.s32 0, %v101
    %v103 = vrot.slane %v58, %v102
    %v104 = vlaneseq
    %v105 = vshrl.u32 %v104, 7
    %v106 = vsub.s32 1, %v105
    %v107 = vrot.slane %v58, %v106
    %v111 = vlaneseq
    %v112 = vshrl.u32 %v111, 7
    %v113 = vsub.s32 0, %v112
    %v114 = vrot.slane %v59, %v113
    %v115 = vlaneseq
    %v116 = vshrl.u32 %v115, 7
    %v117 = vsub.s32 1, %v116
    %v118 = vrot.slane %v59, %v117
    %v122 = vlaneseq
    %v123 = vshrl.u32 %v122, 7
    %v124 = vsub.s32 0, %v123
    %v125 = vrot.slane %v60, %v124
    %v126 = vlaneseq
    %v127 = vshrl.u32 %v126, 7
    %v128 = vsub.s32 1, %v127
    %v129 = vrot.slane %v60, %v128
    %v133 = vlaneseq
    %v134 = vshrl.u32 %v133, 7
    %v135 = vsub.s32 0, %v134
    %v136 = vrot.slane %v61, %v135
    %v137 = vlaneseq
    %v138 = vshrl.u32 %v137, 7
    %v139 = vsub.s32 1, %v138
    %v140 = vrot.slane %v61, %v139
    %v144 = vlaneseq
    %v145 = vshrl.u32 %v144, 7
    %v146 = vsub.s32 0, %v145
    %v147 = vrot.slane %v63, %v146
    %v148 = vlaneseq
    %v149 = vshrl.u32 %v148, 7
    %v150 = vsub.s32 1, %v149
    %v151 = vrot.slane %v63, %v150
    %v155 = vlaneseq
    %v156 = vshrl.u32 %v155, 7
    %v157 = vsub.s32 0, %v156
    %v158 = vrot.slane %v64, %v157
    %v159 = vlaneseq
    %v160 = vshrl.u32 %v159, 7
    %v161 = vsub.s32 1, %v160
    %v162 = vrot.slane %v64, %v161
    %v166 = vlaneseq
    %v167 = vshrl.u32 %v166, 7
    %v168 = vsub.s32 0, %v167
    %v169 = vrot.slane %v66, %v168
    %v170 = vlaneseq
    %v171 = vshrl.u32 %v170, 7
    %v172 = vsub.s32 1, %v171
    %v173 = vrot.slane %v66, %v172
    %v177 = vlaneseq
    %v178 = vshrl.u32 %v177, 7
    %v179 = vsub.s32 0, %v178
    %v180 = vrot.slane %v70, %v179
    %v181 = vlaneseq
    %v182 = vshrl.u32 %v181, 7
    %v183 = vsub.s32 1, %v182
    %v184 = vrot.slane %v70, %v183
    %v188 = vlaneseq
    %v189 = vshrl.u32 %v188, 7
    %v190 = vsub.s32 0, %v189
    %v191 = vrot.slane %v72, %v190
    %v192 = vlaneseq
    %v193 = vshrl.u32 %v192, 7
    %v194 = vsub.s32 1, %v193
    %v195 = vrot.slane %v72, %v194
    %v199 = vlaneseq
    %v200 = vshrl.u32 %v199, 7
    %v201 = vsub.s32 0, %v200
    %v202 = vrot.slane %v76, %v201
    %v203 = vlaneseq
    %v204 = vshrl.u32 %v203, 7
    %v205 = vsub.s32 1, %v204
    %v206 = vrot.slane %v76, %v205
    %v210 = vlaneseq
    %v211 = vshrl.u32 %v210, 7
    %v212 = vsub.s32 0, %v211
    %v213 = vrot.slane %v79, %v212
    %v214 = vlaneseq
    %v215 = vshrl.u32 %v214, 7
    %v216 = vsub.s32 1, %v215
    %v217 = vrot.slane %v79, %v216
    %v221 = vlaneseq
    %v222 = vshrl.u32 %v221, 7
    %v223 = vsub.s32 0, %v222
    %v224 = vrot.slane %v81, %v223
    %v225 = vlaneseq
    %v226 = vshrl.u32 %v225, 7
    %v227 = vsub.s32 1, %v226
    %v228 = vrot.slane %v81, %v227
    %v232 = vlaneseq
    %v233 = vshrl.u32 %v232, 7
    %v234 = vsub.s32 0, %v233
    %v235 = vrot.slane %v83, %v234
    %v236 = vlaneseq
    %v237 = vshrl.u32 %v236, 7
    %v238 = vsub.s32 1, %v237
    %v239 = vrot.slane %v83, %v238
    %v243 = vlaneseq
    %v244 = vshrl.u32 %v243, 7
    %v245 = vsub.s32 0, %v244
    %v246 = vrot.slane %v87, %v245
    %v247 = vlaneseq
    %v248 = vshrl.u32 %v247, 7
    %v249 = vsub.s32 1, %v248
    %v250 = vrot.slane %v87, %v249
    %vm253 = vcmask 1040384
    %v254 = vsel %vm253, 0.2820948, %v92
    %v255 = vsel %vm253, 0.2820948, %v96
    %vm256 = vcmask 1041408
    %v257 = vsel %vm256, %v254, %v103
    %v258 = vsel %vm256, %v255, %v107
    %vm259 = vcmask 1042432
    %v260 = vsel %vm259, %v257, %v114
    %v261 = vsel %vm259, %v258, %v118
    %vm262 = vcmask 1043456
    %v263 = vsel %vm262, %v260, %v125
    %v264 = vsel %vm262, %v261, %v129
    %vm265 = vcmask 1044480
    %v266 = vsel %vm265, %v263, %v136
    %v267 = vsel %vm265, %v264, %v140
    %vm268 = vcmask 1045504
    %v269 = vsel %vm268, %v266, %v147
    %v270 = vsel %vm268, %v267, %v151
    %vm271 = vcmask 1046528
    %v272 = vsel %vm271, %v269, %v158
    %v273 = vsel %vm271, %v270, %v162
    %v274 = vsel %vm253, %v169, %v180
    %v275 = vsel %vm253, %v173, %v184
    %v276 = vsel %vm256, %v274, %v191
    %v277 = vsel %vm256, %v275, %v195
    %v278 = vsel %vm259, %v276, %v202
    %v279 = vsel %vm259, %v277, %v206
    %v280 = vsel %vm262, %v278, %v213
    %v281 = vsel %vm262, %v279, %v217
    %v282 = vsel %vm265, %v280, %v224
    %v283 = vsel %vm265, %v281, %v228
    %v284 = vsel %vm268, %v282, %v235
    %v285 = vsel %vm268, %v283, %v239
    %v286 = vsel %vm271, %v284, %v246
    %v287 = vsel %vm271, %v285, %v250
    %v288 = vld [vmem:[#allocation2] sm:$0xff]
    %v289 = vld [vmem:[#allocation2 + $0x8] sm:$0xff]
    %v290 = vld [vmem:[#allocation2 + $0x10] sm:$0xff]
    %v291 = vld [vmem:[#allocation2 + $0x18] sm:$0xff]
    %v292 = vld [vmem:[%s2] sm:$0xff]
    %v293 = vld [vmem:[%s2 + $0x8] sm:$0xff]
    %v294 = vld [vmem:[%s2 + $0x10] sm:$0xff]
    %v295 = vld [vmem:[%s2 + $0x18] sm:$0xff]
    %297 = vset.pattern.permute.xlu0 0
    %298 = vperm.xlu0 %297, %v292
    %v299 = vpop.permute.xlu0 %298
    %302 = vset.pattern.permute.xlu0 0
    %303 = vperm.xlu0 %302, %v293
    %v304 = vpop.permute.xlu0 %303
    %307 = vset.pattern.permute.xlu0 0
    %308 = vperm.xlu0 %307, %v294
    %v309 = vpop.permute.xlu0 %308
    %312 = vset.pattern.permute.xlu0 0
    %313 = vperm.xlu0 %312, %v295
    %v314 = vpop.permute.xlu0 %313
    %vm316 = vcmask 261120
    %v318 = vsel %vm316, %v288, 0
    %v321 = vsel %vm316, %v289, 0
    %v324 = vsel %vm316, %v290, 0
    %v327 = vsel %vm316, %v291, 0
    %329 = vmatprep.subr.mxu0 %v273
    %330 = vmatpush1.msra.mxu0 %v272
    %331 = vmatprep.subr.mxu0 %v287
    %332 = vmatpush1.msra.mxu0 %v286
    %333 = vmatprep.subr.mxu0 %v42
    %334 = vmatpush1.msra.mxu0 %v41
    %335 = vmatprep.subr.mxu0 %v44
    %336 = vmatpush1.msra.mxu0 %v43
    %337 = vmatprep.subr.mxu0 0.0
    %338 = vmatpush1.msra.mxu0 0.0
    %339 = vmatprep.subr.mxu0 0.0
    %340 = vmatpush1.msra.mxu0 0.0
    %341 = vmatprep.subr.mxu0 0.0
    %342 = vmatpush1.msra.mxu0 0.0
    %343 = vmatprep.subr.mxu0 0.0
    %344 = vmatpush1.msra.mxu0 0.0
    %345 = vmatprep.subr.mxu0 0.0
    %346 = vmatpush1.msra.mxu0 0.0
    %347 = vmatprep.subr.mxu0 0.0
    %348 = vmatpush1.msra.mxu0 0.0
    %349 = vmatprep.subr.mxu0 0.0
    %350 = vmatpush1.msra.mxu0 0.0
    %351 = vmatprep.subr.mxu0 0.0
    %352 = vmatpush1.msra.mxu0 0.0
    %353 = vmatprep.subr.mxu0 0.0
    %354 = vmatpush1.msra.mxu0 0.0
    %355 = vmatprep.subr.mxu0 0.0
    %356 = vmatpush1.msra.mxu0 0.0
    %357 = vmatprep.subr.mxu0 0.0
    %358 = vmatpush1.msra.mxu0 0.0
    %359 = vmatprep.subr.mxu0 0.0
    %360 = vmatpush1.msra.mxu0 0.0
    %361 = vmatprep.subr.mxu0 0.0
    %362 = vmatpush1.msra.mxu0 0.0
    %363 = vmatprep.subr.mxu0 0.0
    %364 = vmatpush1.msra.mxu0 0.0
    %365 = vmatprep.subr.mxu0 0.0
    %366 = vmatpush1.msra.mxu0 0.0
    %367 = vmatprep.subr.mxu0 0.0
    %368 = vmatpush1.msra.mxu0 0.0
    %369 = vmatprep.subr.mxu0 0.0
    %370 = vmatpush1.msra.mxu0 0.0
    %371 = vmatprep.subr.mxu0 0.0
    %372 = vmatpush1.msra.mxu0 0.0
    %373 = vmatprep.subr.mxu0 0.0
    %374 = vmatpush1.msra.mxu0 0.0
    %375 = vmatprep.subr.mxu0 0.0
    %376 = vmatpush1.msra.mxu0 0.0
    %377 = vmatprep.subr.mxu0 0.0
    %378 = vmatpush1.msra.mxu0 0.0
    %379 = vmatprep.subr.mxu0 0.0
    %380 = vmatpush1.msra.mxu0 0.0
    %381 = vmatprep.subr.mxu0 0.0
    %382 = vmatpush1.msra.mxu0 0.0
    %383 = vmatprep.subr.mxu0 0.0
    %384 = vmatpush1.msra.mxu0 0.0
    %385 = vmatprep.subr.mxu0 0.0
    %386 = vmatpush1.msra.mxu0 0.0
    %387 = vmatprep.subr.mxu0 0.0
    %388 = vmatpush1.msra.mxu0 0.0
    %389 = vmatprep.subr.mxu0 0.0
    %390 = vmatpush1.msra.mxu0 0.0
    %391 = vmatprep.subr.mxu0 0.0
    %392 = vmatpush1.msra.mxu0 0.0
    %393 = vmatprep.mubr.f32.mxu0 0.0
    %394 = vmatmul.mubr.f32.gmra.mrb[0].mxu0 %v318
    %v395 = vpop.f32.mrb[0].mxu0
    %v396 = vadd.f32 %v299, %v395
    %v397 = vpop.f32.mrb[0].mxu0
    %v398 = vadd.f32 %v299, %v397
    %399 = vmatprep.mubr.f32.mxu0 0.0
    %400 = vmatmul.mubr.f32.gmra.mrb[0].mxu0 %v321
    %v401 = vpop.f32.mrb[0].mxu0
    %v402 = vadd.f32 %v304, %v401
    %v403 = vpop.f32.mrb[0].mxu0
    %v404 = vadd.f32 %v304, %v403
    %405 = vmatprep.mubr.f32.mxu0 0.0
    %406 = vmatmul.mubr.f32.gmra.mrb[0].mxu0 %v324
    %v407 = vpop.f32.mrb[0].mxu0
    %v408 = vadd.f32 %v309, %v407
    %v409 = vpop.f32.mrb[0].mxu0
    %v410 = vadd.f32 %v309, %v409
    %411 = vmatprep.mubr.f32.mxu0 0.0
    %412 = vmatmul.mubr.f32.gmra.mrb[0].mxu0 %v327
    %v413 = vpop.f32.mrb[0].mxu0
    %v414 = vadd.f32 %v314, %v413
    %v415 = vpop.f32.mrb[0].mxu0
    %v416 = vadd.f32 %v314, %v415
    %417 = vdwg.mxu0
    %v418 = vmax.f32 %v396, 0.0
    %v419 = vmax.f32 %v398, 0.0
    %v420 = vmax.f32 %v402, 0.0
    %v421 = vmax.f32 %v404, 0.0
    %v422 = vmax.f32 %v408, 0.0
    %v423 = vmax.f32 %v410, 0.0
    %v424 = vmax.f32 %v414, 0.0
    %v425 = vmax.f32 %v416, 0.0
    %v426 = vld [vmem:[%s3] sm:$0xff]
    %v427 = vld [vmem:[%s3 + $0x8] sm:$0xff]
    %v428 = vld [vmem:[%s3 + $0x10] sm:$0xff]
    %v429 = vld [vmem:[%s3 + $0x18] sm:$0xff]
    %v430 = vld [vmem:[%s4] sm:$0xff]
    %v431 = vld [vmem:[%s4 + $0x8] sm:$0xff]
    %v432 = vld [vmem:[%s4 + $0x10] sm:$0xff]
    %v433 = vld [vmem:[%s4 + $0x18] sm:$0xff]
    %435 = vset.pattern.permute.xlu0 0
    %436 = vperm.xlu0 %435, %v430
    %v437 = vpop.permute.xlu0 %436
    %440 = vset.pattern.permute.xlu0 0
    %441 = vperm.xlu0 %440, %v431
    %v442 = vpop.permute.xlu0 %441
    %445 = vset.pattern.permute.xlu0 0
    %446 = vperm.xlu0 %445, %v432
    %v447 = vpop.permute.xlu0 %446
    %450 = vset.pattern.permute.xlu0 0
    %451 = vperm.xlu0 %450, %v433
    %v452 = vpop.permute.xlu0 %451
    %v455 = vsel %vm316, %v426, 0
    %v458 = vsel %vm316, %v427, 0
    %v461 = vsel %vm316, %v428, 0
    %v464 = vsel %vm316, %v429, 0
    %466 = vmatprep.subr.mxu0 %v419
    %467 = vmatpush1.msra.mxu0 %v418
    %468 = vmatprep.subr.mxu0 %v421
    %469 = vmatpush1.msra.mxu0 %v420
    %470 = vmatprep.subr.mxu0 %v423
    %471 = vmatpush1.msra.mxu0 %v422
    %472 = vmatprep.subr.mxu0 %v425
    %473 = vmatpush1.msra.mxu0 %v424
    %474 = vmatprep.subr.mxu0 0.0
    %475 = vmatpush1.msra.mxu0 0.0
    %476 = vmatprep.subr.mxu0 0.0
    %477 = vmatpush1.msra.mxu0 0.0
    %478 = vmatprep.subr.mxu0 0.0
    %479 = vmatpush1.msra.mxu0 0.0
    %480 = vmatprep.subr.mxu0 0.0
    %481 = vmatpush1.msra.mxu0 0.0
    %482 = vmatprep.subr.mxu0 0.0
    %483 = vmatpush1.msra.mxu0 0.0
    %484 = vmatprep.subr.mxu0 0.0
    %485 = vmatpush1.msra.mxu0 0.0
    %486 = vmatprep.subr.mxu0 0.0
    %487 = vmatpush1.msra.mxu0 0.0
    %488 = vmatprep.subr.mxu0 0.0
    %489 = vmatpush1.msra.mxu0 0.0
    %490 = vmatprep.subr.mxu0 0.0
    %491 = vmatpush1.msra.mxu0 0.0
    %492 = vmatprep.subr.mxu0 0.0
    %493 = vmatpush1.msra.mxu0 0.0
    %494 = vmatprep.subr.mxu0 0.0
    %495 = vmatpush1.msra.mxu0 0.0
    %496 = vmatprep.subr.mxu0 0.0
    %497 = vmatpush1.msra.mxu0 0.0
    %498 = vmatprep.subr.mxu0 0.0
    %499 = vmatpush1.msra.mxu0 0.0
    %500 = vmatprep.subr.mxu0 0.0
    %501 = vmatpush1.msra.mxu0 0.0
    %502 = vmatprep.subr.mxu0 0.0
    %503 = vmatpush1.msra.mxu0 0.0
    %504 = vmatprep.subr.mxu0 0.0
    %505 = vmatpush1.msra.mxu0 0.0
    %506 = vmatprep.subr.mxu0 0.0
    %507 = vmatpush1.msra.mxu0 0.0
    %508 = vmatprep.subr.mxu0 0.0
    %509 = vmatpush1.msra.mxu0 0.0
    %510 = vmatprep.subr.mxu0 0.0
    %511 = vmatpush1.msra.mxu0 0.0
    %512 = vmatprep.subr.mxu0 0.0
    %513 = vmatpush1.msra.mxu0 0.0
    %514 = vmatprep.subr.mxu0 0.0
    %515 = vmatpush1.msra.mxu0 0.0
    %516 = vmatprep.subr.mxu0 0.0
    %517 = vmatpush1.msra.mxu0 0.0
    %518 = vmatprep.subr.mxu0 0.0
    %519 = vmatpush1.msra.mxu0 0.0
    %520 = vmatprep.subr.mxu0 0.0
    %521 = vmatpush1.msra.mxu0 0.0
    %522 = vmatprep.subr.mxu0 0.0
    %523 = vmatpush1.msra.mxu0 0.0
    %524 = vmatprep.subr.mxu0 0.0
    %525 = vmatpush1.msra.mxu0 0.0
    %526 = vmatprep.subr.mxu0 0.0
    %527 = vmatpush1.msra.mxu0 0.0
    %528 = vmatprep.subr.mxu0 0.0
    %529 = vmatpush1.msra.mxu0 0.0
    %530 = vmatprep.mubr.f32.mxu0 0.0
    %531 = vmatmul.mubr.f32.gmra.mrb[0].mxu0 %v455
    %v532 = vpop.f32.mrb[0].mxu0
    %v533 = vadd.f32 %v437, %v532
    %v534 = vpop.f32.mrb[0].mxu0
    %v535 = vadd.f32 %v437, %v534
    %536 = vmatprep.mubr.f32.mxu0 0.0
    %537 = vmatmul.mubr.f32.gmra.mrb[0].mxu0 %v458
    %v538 = vpop.f32.mrb[0].mxu0
    %v539 = vadd.f32 %v442, %v538
    %v540 = vpop.f32.mrb[0].mxu0
    %v541 = vadd.f32 %v442, %v540
    %542 = vmatprep.mubr.f32.mxu0 0.0
    %543 = vmatmul.mubr.f32.gmra.mrb[0].mxu0 %v461
    %v544 = vpop.f32.mrb[0].mxu0
    %v545 = vadd.f32 %v447, %v544
    %v546 = vpop.f32.mrb[0].mxu0
    %v547 = vadd.f32 %v447, %v546
    %548 = vmatprep.mubr.f32.mxu0 0.0
    %549 = vmatmul.mubr.f32.gmra.mrb[0].mxu0 %v464
    %v550 = vpop.f32.mrb[0].mxu0
    %v551 = vadd.f32 %v452, %v550
    %v552 = vpop.f32.mrb[0].mxu0
    %v553 = vadd.f32 %v452, %v552
    %554 = vdwg.mxu0
    %v555 = vmax.f32 %v533, 0.0
    %v556 = vmax.f32 %v535, 0.0
    %v557 = vmax.f32 %v539, 0.0
    %v558 = vmax.f32 %v541, 0.0
    %v559 = vmax.f32 %v545, 0.0
    %v560 = vmax.f32 %v547, 0.0
    %v561 = vmax.f32 %v551, 0.0
    %v562 = vmax.f32 %v553, 0.0
    %s563 = scalar_lea.vmem %s3, 32
    %v564 = vld [vmem:[%s563] sm:$0xff]
    %v565 = vld [vmem:[%s563 + $0x8] sm:$0xff]
    %v566 = vld [vmem:[%s563 + $0x10] sm:$0xff]
    %v567 = vld [vmem:[%s563 + $0x18] sm:$0xff]
    %s568 = scalar_lea.vmem %s4, 32
    %v569 = vld [vmem:[%s568] sm:$0xff]
    %v570 = vld [vmem:[%s568 + $0x8] sm:$0xff]
    %v571 = vld [vmem:[%s568 + $0x10] sm:$0xff]
    %v572 = vld [vmem:[%s568 + $0x18] sm:$0xff]
    %574 = vset.pattern.permute.xlu0 0
    %575 = vperm.xlu0 %574, %v569
    %v576 = vpop.permute.xlu0 %575
    %579 = vset.pattern.permute.xlu0 0
    %580 = vperm.xlu0 %579, %v570
    %v581 = vpop.permute.xlu0 %580
    %584 = vset.pattern.permute.xlu0 0
    %585 = vperm.xlu0 %584, %v571
    %v586 = vpop.permute.xlu0 %585
    %589 = vset.pattern.permute.xlu0 0
    %590 = vperm.xlu0 %589, %v572
    %v591 = vpop.permute.xlu0 %590
    %v594 = vsel %vm316, %v564, 0
    %v597 = vsel %vm316, %v565, 0
    %v600 = vsel %vm316, %v566, 0
    %v603 = vsel %vm316, %v567, 0
    %605 = vmatprep.subr.mxu0 %v556
    %606 = vmatpush1.msra.mxu0 %v555
    %607 = vmatprep.subr.mxu0 %v558
    %608 = vmatpush1.msra.mxu0 %v557
    %609 = vmatprep.subr.mxu0 %v560
    %610 = vmatpush1.msra.mxu0 %v559
    %611 = vmatprep.subr.mxu0 %v562
    %612 = vmatpush1.msra.mxu0 %v561
    %613 = vmatprep.subr.mxu0 0.0
    %614 = vmatpush1.msra.mxu0 0.0
    %615 = vmatprep.subr.mxu0 0.0
    %616 = vmatpush1.msra.mxu0 0.0
    %617 = vmatprep.subr.mxu0 0.0
    %618 = vmatpush1.msra.mxu0 0.0
    %619 = vmatprep.subr.mxu0 0.0
    %620 = vmatpush1.msra.mxu0 0.0
    %621 = vmatprep.subr.mxu0 0.0
    %622 = vmatpush1.msra.mxu0 0.0
    %623 = vmatprep.subr.mxu0 0.0
    %624 = vmatpush1.msra.mxu0 0.0
    %625 = vmatprep.subr.mxu0 0.0
    %626 = vmatpush1.msra.mxu0 0.0
    %627 = vmatprep.subr.mxu0 0.0
    %628 = vmatpush1.msra.mxu0 0.0
    %629 = vmatprep.subr.mxu0 0.0
    %630 = vmatpush1.msra.mxu0 0.0
    %631 = vmatprep.subr.mxu0 0.0
    %632 = vmatpush1.msra.mxu0 0.0
    %633 = vmatprep.subr.mxu0 0.0
    %634 = vmatpush1.msra.mxu0 0.0
    %635 = vmatprep.subr.mxu0 0.0
    %636 = vmatpush1.msra.mxu0 0.0
    %637 = vmatprep.subr.mxu0 0.0
    %638 = vmatpush1.msra.mxu0 0.0
    %639 = vmatprep.subr.mxu0 0.0
    %640 = vmatpush1.msra.mxu0 0.0
    %641 = vmatprep.subr.mxu0 0.0
    %642 = vmatpush1.msra.mxu0 0.0
    %643 = vmatprep.subr.mxu0 0.0
    %644 = vmatpush1.msra.mxu0 0.0
    %645 = vmatprep.subr.mxu0 0.0
    %646 = vmatpush1.msra.mxu0 0.0
    %647 = vmatprep.subr.mxu0 0.0
    %648 = vmatpush1.msra.mxu0 0.0
    %649 = vmatprep.subr.mxu0 0.0
    %650 = vmatpush1.msra.mxu0 0.0
    %651 = vmatprep.subr.mxu0 0.0
    %652 = vmatpush1.msra.mxu0 0.0
    %653 = vmatprep.subr.mxu0 0.0
    %654 = vmatpush1.msra.mxu0 0.0
    %655 = vmatprep.subr.mxu0 0.0
    %656 = vmatpush1.msra.mxu0 0.0
    %657 = vmatprep.subr.mxu0 0.0
    %658 = vmatpush1.msra.mxu0 0.0
    %659 = vmatprep.subr.mxu0 0.0
    %660 = vmatpush1.msra.mxu0 0.0
    %661 = vmatprep.subr.mxu0 0.0
    %662 = vmatpush1.msra.mxu0 0.0
    %663 = vmatprep.subr.mxu0 0.0
    %664 = vmatpush1.msra.mxu0 0.0
    %665 = vmatprep.subr.mxu0 0.0
    %666 = vmatpush1.msra.mxu0 0.0
    %667 = vmatprep.subr.mxu0 0.0
    %668 = vmatpush1.msra.mxu0 0.0
    %669 = vmatprep.mubr.f32.mxu0 0.0
    %670 = vmatmul.mubr.f32.gmra.mrb[0].mxu0 %v594
    %v671 = vpop.f32.mrb[0].mxu0
    %v672 = vadd.f32 %v576, %v671
    %v673 = vpop.f32.mrb[0].mxu0
    %v674 = vadd.f32 %v576, %v673
    %675 = vmatprep.mubr.f32.mxu0 0.0
    %676 = vmatmul.mubr.f32.gmra.mrb[0].mxu0 %v597
    %v677 = vpop.f32.mrb[0].mxu0
    %v678 = vadd.f32 %v581, %v677
    %v679 = vpop.f32.mrb[0].mxu0
    %v680 = vadd.f32 %v581, %v679
    %681 = vmatprep.mubr.f32.mxu0 0.0
    %682 = vmatmul.mubr.f32.gmra.mrb[0].mxu0 %v600
    %v683 = vpop.f32.mrb[0].mxu0
    %v684 = vadd.f32 %v586, %v683
    %v685 = vpop.f32.mrb[0].mxu0
    %v686 = vadd.f32 %v586, %v685
    %687 = vmatprep.mubr.f32.mxu0 0.0
    %688 = vmatmul.mubr.f32.gmra.mrb[0].mxu0 %v603
    %v689 = vpop.f32.mrb[0].mxu0
    %v690 = vadd.f32 %v591, %v689
    %v691 = vpop.f32.mrb[0].mxu0
    %v692 = vadd.f32 %v591, %v691
    %693 = vdwg.mxu0
    %v694 = vmax.f32 %v672, 0.0
    %v695 = vmax.f32 %v674, 0.0
    %v696 = vmax.f32 %v678, 0.0
    %v697 = vmax.f32 %v680, 0.0
    %v698 = vmax.f32 %v684, 0.0
    %v699 = vmax.f32 %v686, 0.0
    %v700 = vmax.f32 %v690, 0.0
    %v701 = vmax.f32 %v692, 0.0
    %v702 = vld [vmem:[%s5] sm:$0x7]
    %v703 = vld [vmem:[%s6] sm:$0x7]
    %705 = vset.pattern.permute.xlu0 0
    %706 = vperm.xlu0 %705, %v703
    %v707 = vpop.permute.xlu0 %706
    %v710 = vsel %vm316, %v702, 0
    %712 = vmatprep.subr.mxu0 %v695
    %713 = vmatpush1.msra.mxu0 %v694
    %714 = vmatprep.subr.mxu0 %v697
    %715 = vmatpush1.msra.mxu0 %v696
    %716 = vmatprep.subr.mxu0 %v699
    %717 = vmatpush1.msra.mxu0 %v698
    %718 = vmatprep.subr.mxu0 %v701
    %719 = vmatpush1.msra.mxu0 %v700
    %720 = vmatprep.subr.mxu0 0.0
    %721 = vmatpush1.msra.mxu0 0.0
    %722 = vmatprep.subr.mxu0 0.0
    %723 = vmatpush1.msra.mxu0 0.0
    %724 = vmatprep.subr.mxu0 0.0
    %725 = vmatpush1.msra.mxu0 0.0
    %726 = vmatprep.subr.mxu0 0.0
    %727 = vmatpush1.msra.mxu0 0.0
    %728 = vmatprep.subr.mxu0 0.0
    %729 = vmatpush1.msra.mxu0 0.0
    %730 = vmatprep.subr.mxu0 0.0
    %731 = vmatpush1.msra.mxu0 0.0
    %732 = vmatprep.subr.mxu0 0.0
    %733 = vmatpush1.msra.mxu0 0.0
    %734 = vmatprep.subr.mxu0 0.0
    %735 = vmatpush1.msra.mxu0 0.0
    %736 = vmatprep.subr.mxu0 0.0
    %737 = vmatpush1.msra.mxu0 0.0
    %738 = vmatprep.subr.mxu0 0.0
    %739 = vmatpush1.msra.mxu0 0.0
    %740 = vmatprep.subr.mxu0 0.0
    %741 = vmatpush1.msra.mxu0 0.0
    %742 = vmatprep.subr.mxu0 0.0
    %743 = vmatpush1.msra.mxu0 0.0
    %744 = vmatprep.subr.mxu0 0.0
    %745 = vmatpush1.msra.mxu0 0.0
    %746 = vmatprep.subr.mxu0 0.0
    %747 = vmatpush1.msra.mxu0 0.0
    %748 = vmatprep.subr.mxu0 0.0
    %749 = vmatpush1.msra.mxu0 0.0
    %750 = vmatprep.subr.mxu0 0.0
    %751 = vmatpush1.msra.mxu0 0.0
    %752 = vmatprep.subr.mxu0 0.0
    %753 = vmatpush1.msra.mxu0 0.0
    %754 = vmatprep.subr.mxu0 0.0
    %755 = vmatpush1.msra.mxu0 0.0
    %756 = vmatprep.subr.mxu0 0.0
    %757 = vmatpush1.msra.mxu0 0.0
    %758 = vmatprep.subr.mxu0 0.0
    %759 = vmatpush1.msra.mxu0 0.0
    %760 = vmatprep.subr.mxu0 0.0
    %761 = vmatpush1.msra.mxu0 0.0
    %762 = vmatprep.subr.mxu0 0.0
    %763 = vmatpush1.msra.mxu0 0.0
    %764 = vmatprep.subr.mxu0 0.0
    %765 = vmatpush1.msra.mxu0 0.0
    %766 = vmatprep.subr.mxu0 0.0
    %767 = vmatpush1.msra.mxu0 0.0
    %768 = vmatprep.subr.mxu0 0.0
    %769 = vmatpush1.msra.mxu0 0.0
    %770 = vmatprep.subr.mxu0 0.0
    %771 = vmatpush1.msra.mxu0 0.0
    %772 = vmatprep.subr.mxu0 0.0
    %773 = vmatpush1.msra.mxu0 0.0
    %774 = vmatprep.subr.mxu0 0.0
    %775 = vmatpush1.msra.mxu0 0.0
    %776 = vmatprep.mubr.f32.mxu0 0.0
    %777 = vmatmul.mubr.f32.gmra.mrb[0].mxu0 %v710
    %v778 = vpop.f32.mrb[0].mxu0
    %v779 = vadd.f32 %v707, %v778
    %v780 = vpop.f32.mrb[0].mxu0
    %v781 = vadd.f32 %v707, %v780
    %782 = vdwg.mxu0
    %v785 = vcombine.low %v779, %v781
    %787 = vst [vmem:[#allocation5] sm:$0x77] %v785
    // Predicated region
    $region34: #{tpu_custom_call.1} parent=1 // pred_check
      _
    $region35: #{tpu_custom_call.1} parent=1 // pred_check_branch
      %789 = sbr.rel (0) target = $region37
    $region36: #{tpu_custom_call.1} parent=1 // pred_region
      %s791 = ssub.s32 128, 128
      %792 = vsyncadd [#allocation4], %s791
      %s794 = sshll.u32 [#allocation5], 4
      %s795 = int_to_ptr.vmem [resolvable:$true] %s794
      %797 = dma.vmem_to_hbm [thread:$0]  %s795, 128, %s7, [#allocation4]
    $region37: #{tpu_custom_call.1} parent=1 // pred_fallthru
      _
    // Predicated region
    $region38: #{tpu_custom_call.1} parent=1 // pred_check
      _
    $region39: #{tpu_custom_call.1} parent=1 // pred_check_branch
      %799 = sbr.rel (0) target = $region41
    $region40: #{tpu_custom_call.1} parent=1 // pred_region
      %800 = dma.done [#allocation4], 128
    $region41: #{tpu_custom_call.1} parent=1 // pred_fallthru
      _
    %801 = vsyncpa [#allocation3], 1
    %802 = vsyncpa [#allocation4], 1

</llo_original>
